<compile_context>
chip_gen: v6e
topology: v6e:2x2x1
jax: 0.10.0
libtpu: 0.0.40
codegen_flags: <defaults>
</compile_context>

<pallas_src>
import functools

import jax
import jax.numpy as jnp
from jax.experimental import pallas as pl
from jax.experimental.pallas import tpu as pltpu


# ----------------------------------------------------------------------------
# helpers
# ----------------------------------------------------------------------------
def _cdiv(a, b):
    return -(-a // b)


def _round_up(x, m):
    return _cdiv(x, m) * m


def _vmem_limit_bytes():
    """Generation-aware scoped-VMEM budget (conservative fraction of physical)."""
    try:
        cap = pltpu.get_tpu_info().vmem_capacity_bytes
    except Exception:
        cap = 64 * 1024 * 1024          # v7x-safe fallback
    return int(min(cap * 3 // 4, 100 * 1024 * 1024))


_VMEM_LIMIT = _vmem_limit_bytes()


# ----------------------------------------------------------------------------
# Pallas kernels
# ----------------------------------------------------------------------------
def _conv_kernel(x_ref, w_ref, scale_ref, shift_ref, o_ref, acc_ref, *,
                 offsets, rw):
    """One (batch, out-depth) plane, one depth tap `a` (= grid axis 2).

    x_ref:     (1, 1, Lp, Ce)   bf16  flattened, phase-split input plane do+a
    w_ref:     (kd*T, Ce, Cop)  bf16  full weight, VMEM-resident (constant idx)
    scale_ref: (1, Cop)         f32   fused inference-BN scale
    shift_ref: (1, Cop)         f32   fused inference-BN shift
    o_ref:     (1, 1, Rw, Cop)  bf16  wide output rows (Rw = Ho * Wq)
    acc_ref:   (Rw, Cop)        f32   accumulator scratch (resident across a)
    """
    a = pl.program_id(2)
    n_taps = len(offsets)

    # Spatial tap 0: write the accumulator directly at a == 0
    # (saves the zero-init + read-modify-write pass).
    rows0 = x_ref[0, 0, pl.ds(offsets[0], rw), :]
    first = jnp.dot(rows0, w_ref[a * n_taps],
                    preferred_element_type=jnp.float32)

    @pl.when(a == 0)
    def _():
        acc_ref[...] = first

    @pl.when(a > 0)
    def _():
        acc_ref[...] += first

    # Remaining spatial taps: shifted contiguous windows of the same VMEM plane
    # (no HBM duplication), each contracted against its (Ce, Cop) weight slab.
    for t in range(1, n_taps):
        rows = x_ref[0, 0, pl.ds(offsets[t], rw), :]
        acc_ref[...] += jnp.dot(rows, w_ref[a * n_taps + t],
                                preferred_element_type=jnp.float32)

    # Fused inference-BN + ReLU epilogue, lane-dense bf16 writeback.
    @pl.when(a == pl.num_programs(2) - 1)
    def _():
        y = acc_ref[...] * scale_ref[...] + shift_ref[...]
        o_ref[0, 0] = jnp.maximum(y, 0.0).astype(o_ref.dtype)


def _linear_kernel(x_ref, w_ref, b_ref, o_ref):
    o_ref[...] = (
        jnp.dot(x_ref[...], w_ref[...], preferred_element_type=jnp.float32)
        + b_ref[...]
    ).astype(o_ref.dtype)


# ----------------------------------------------------------------------------
# Wrappers
# ----------------------------------------------------------------------------
def conv3d_bn_relu(x, w, scale, shift, *, stride, padding):
    """x: (N, D, H, W, Cin) f32/bf16.  w: (Cout, Cin, kd, kh, kw) (PyTorch layout).
    scale/shift: (Cout,) fused inference-BN affine.
    Returns (N, Do, Ho, Wo, Cout) bf16."""
    N, D, H, W, Cin = x.shape
    Cout, Cin_w, kd, kh, kw = w.shape
    assert Cin_w == Cin
    sd, sh, sw = stride
    pd, ph, pw = padding
    assert sd == 1, "only depth-stride 1 is used by this model"

    Dp, Hp, Wp = D + 2 * pd, H + 2 * ph, W + 2 * pw
    Do = Dp - kd + 1
    Ho = (Hp - kh) // sh + 1
    Wo = (Wp - kw) // sw + 1

    # Phase-split geometry: a stride-(sh, sw) conv over (Hp, Wp) becomes a
    # stride-1 conv over (Hq, Wq) with sh*sw*Cin channels and a ceil(k/s) kernel
    # (missing taps get zero weights).
    Hq, Wq = _cdiv(Hp, sh), _cdiv(Wp, sw)
    khq, kwq = _cdiv(kh, sh), _cdiv(kw, sw)
    Ce = sh * sw * Cin
    Cop = _round_up(Cout, 128)          # lane-dense output channels
    Lp = (Hq + 1) * Wq                  # +1 margin row so tap reads stay in range
    Rw = Ho * Wq                        # "wide" output rows; wo >= Wo columns
                                        # are over-computed and dropped in glue
    T = khq * kwq

    # --- glue: single pad (conv pad + phase alignment + margin), bf16 cast
    #     BEFORE the pad, then phase split.  ~1x input bytes, no im2col.
    xb = x.astype(jnp.bfloat16)
    xpad = jnp.pad(
        xb,
        ((0, 0),
         (pd, pd),
         (ph, ph + (Hq * sh - Hp) + sh),
         (pw, pw + (Wq * sw - Wp)),
         (0, 0)))
    xr = xpad.reshape(N, Dp, Hq + 1, sh, Wq, sw, Cin)
    xr = jnp.transpose(xr, (0, 1, 2, 4, 3, 5, 6))      # (N,Dp,Hq+1,Wq,sh,sw,Cin)
    xf = xr.reshape(N, Dp, Lp, Ce)

    # --- weights: (Cout,Cin,kd,kh,kw) -> (kd*T, Ce, Cop) bf16.  Taps falling
    #     outside the original kernel and the Cout padding are zero.
    wt = jnp.transpose(w, (2, 3, 4, 1, 0))             # (kd, kh, kw, Cin, Cout)
    wt = jnp.pad(wt, ((0, 0), (0, khq * sh - kh), (0, kwq * sw - kw),
                      (0, 0), (0, Cop - Cout)))
    wt = wt.reshape(kd, khq, sh, kwq, sw, Cin, Cop)
    wt = jnp.transpose(wt, (0, 1, 3, 2, 4, 5, 6))      # (kd,khq,kwq,sh,sw,Cin,Cop)
    wf = wt.reshape(kd * T, Ce, Cop).astype(jnp.bfloat16)

    scale2 = jnp.pad(scale.astype(jnp.float32), (0, Cop - Cout)).reshape(1, Cop)
    shift2 = jnp.pad(shift.astype(jnp.float32), (0, Cop - Cout)).reshape(1, Cop)

    # Row offsets of the spatial taps inside the flattened (Hq+1, Wq) plane.
    offsets = tuple(bq * Wq + cq for bq in range(khq) for cq in range(kwq))
    kernel = functools.partial(_conv_kernel, offsets=offsets, rw=Rw)

    out_wide = pl.pallas_call(
        kernel,
        out_shape=jax.ShapeDtypeStruct((N, Do, Rw, Cop), jnp.bfloat16),
        grid_spec=pltpu.PrefetchScalarGridSpec(
            num_scalar_prefetch=0,
            grid=(N, Do, kd),
            in_specs=[
                # input plane for depth slice (do + a); re-read kd times (halo)
                pl.BlockSpec((1, 1, Lp, Ce), lambda n, d, a: (n, d + a, 0, 0)),
                # full weight, VMEM-resident: fetched once, never per tile
                pl.BlockSpec((kd * T, Ce, Cop), lambda n, d, a: (0, 0, 0)),
                pl.BlockSpec((1, Cop), lambda n, d, a: (0, 0)),    # BN scale
                pl.BlockSpec((1, Cop), lambda n, d, a: (0, 0)),    # BN shift
            ],
            out_specs=pl.BlockSpec((1, 1, Rw, Cop), lambda n, d, a: (n, d, 0, 0)),
            scratch_shapes=[pltpu.VMEM((Rw, Cop), jnp.float32)],
        ),
        compiler_params=pltpu.CompilerParams(
            dimension_semantics=("parallel", "parallel", "arbitrary"),
            vmem_limit_bytes=_VMEM_LIMIT,
        ),
    )(xf, wf, scale2, shift2)

    # Drop the over-computed wide columns (wo >= Wo) and the padded channels.
    out = out_wide.reshape(N, Do, Ho, Wq, Cop)[:, :, :, :Wo, :Cout]
    return out


def linear(x, w, b):
    """x: (N, K) f32; w: (O, K) (PyTorch layout); b: (O,)."""
    N, K = x.shape
    O = w.shape[0]
    return pl.pallas_call(
        _linear_kernel,
        out_shape=jax.ShapeDtypeStruct((N, O), jnp.float32),
        grid=(1,),
        in_specs=[
            pl.BlockSpec((N, K), lambda i: (0, 0)),
            pl.BlockSpec((K, O), lambda i: (0, 0)),
            pl.BlockSpec((1, O), lambda i: (0, 0)),
        ],
        out_specs=pl.BlockSpec((N, O), lambda i: (0, 0)),
    )(x, w.T, b.reshape(1, O))


# ----------------------------------------------------------------------------
# Pure-JAX reference (correctness check of the conv kernel)
# ----------------------------------------------------------------------------
def _conv_bn_relu_reference(x, w, scale, shift, stride, padding):
    """f32 reference of the same (bf16-operand) computation."""
    xb = x.astype(jnp.bfloat16).astype(jnp.float32)
    wb = w.astype(jnp.bfloat16).astype(jnp.float32)
    wt = jnp.transpose(wb, (2, 3, 4, 1, 0))            # DHWIO
    pd, ph, pw = padding
    y = jax.lax.conv_general_dilated(
        xb, wt, window_strides=stride,
        padding=((pd, pd), (ph, ph), (pw, pw)),
        dimension_numbers=("NDHWC", "DHWIO", "NDHWC"))
    y = y * scale.reshape(1, 1, 1, 1, -1) + shift.reshape(1, 1, 1, 1, -1)
    return jnp.maximum(y, 0.0)


# ----------------------------------------------------------------------------
# Parameter construction (deterministic, synthetic)
# ----------------------------------------------------------------------------
BN_EPS = 1e-5


def _make_params(key, num_class=20, k=64):
    keys = iter(jax.random.split(key, 128))

    def conv_w(cout, cin, kd, kh, kw):
        fan_in = cin * kd * kh * kw
        return jax.random.normal(next(keys), (cout, cin, kd, kh, kw), jnp.float32) * (
            (2.0 / fan_in) ** 0.5
        )

    def bn(c):
        gamma = 1.0 + 0.1 * jax.random.normal(next(keys), (c,), jnp.float32)
        beta = 0.1 * jax.random.normal(next(keys), (c,), jnp.float32)
        mean = 0.1 * jax.random.normal(next(keys), (c,), jnp.float32)
        var = 0.9 + 0.1 * jnp.abs(jax.random.normal(next(keys), (c,), jnp.float32))
        scale = gamma / jnp.sqrt(var + BN_EPS)
        shift = beta - mean * scale
        return scale, shift

    params = {}
    params["conv1_w"] = conv_w(k, 3, 3, 7, 7)
    params["bn1_scale"], params["bn1_shift"] = bn(k)

    layers = []
    in_ch = k
    for mult in (1, 2, 4, 8):
        out_ch = k * mult
        blocks = []
        for _ in range(2):
            blk = {}
            blk["w1"] = conv_w(out_ch, in_ch, 3, 3, 3)
            blk["s1"], blk["b1"] = bn(out_ch)
            blk["w2"] = conv_w(out_ch, out_ch, 3, 3, 3)
            blk["s2"], blk["b2"] = bn(out_ch)
            blocks.append(blk)
            in_ch = out_ch
        layers.append(blocks)
    params["layers"] = layers

    params["fc_w"] = jax.random.normal(next(keys), (num_class, k * 8), jnp.float32) * (
        1.0 / (k * 8) ** 0.5
    )
    params["fc_b"] = 0.01 * jax.random.normal(next(keys), (num_class,), jnp.float32)
    return params


# ----------------------------------------------------------------------------
# Forward pass (mirrors Conv3d.forward; note: BasicBlock3d has no skip conns)
# ----------------------------------------------------------------------------
def forward(params, x_ncdhw):
    # NCDHW (PyTorch) -> NDHWC (kernel layout)
    x = jnp.transpose(x_ncdhw, (0, 2, 3, 4, 1)).astype(jnp.float32)

    # conv1 + bn1 + relu
    x = conv3d_bn_relu(
        x, params["conv1_w"], params["bn1_scale"], params["bn1_shift"],
        stride=(1, 4, 4), padding=(1, 3, 3),
    )

    # layer1..layer4, each with 2 BasicBlock3d (conv/bn/relu x2, no residual)
    for blocks in params["layers"]:
        for blk in blocks:
            x = conv3d_bn_relu(x, blk["w1"], blk["s1"], blk["b1"],
                               stride=(1, 2, 2), padding=(1, 3, 3))
            x = conv3d_bn_relu(x, blk["w2"], blk["s2"], blk["b2"],
                               stride=(1, 1, 1), padding=(1, 1, 1))

    # AdaptiveAvgPool3d((1,1,1)) + flatten  ->  (N, C)   (glue in plain JAX)
    x = jnp.mean(x.astype(jnp.float32), axis=(1, 2, 3))

    # fc
    return linear(x, params["fc_w"], params["fc_b"])


if __name__ == "__main__":
    key = jax.random.PRNGKey(0)
    pkey, xkey = jax.random.split(key)
    params = _make_params(pkey, num_class=20, k=64)

    # Light correctness check of the conv kernel against a pure-JAX reference
    # for each conv configuration used by the model.
    ck = jax.random.PRNGKey(2)
    for cin, cout, ksz, st, pad in [
        (3, 64, (3, 7, 7), (1, 4, 4), (1, 3, 3)),
        (64, 128, (3, 3, 3), (1, 2, 2), (1, 3, 3)),
        (128, 128, (3, 3, 3), (1, 1, 1), (1, 1, 1)),
    ]:
        k1, k2, ck = jax.random.split(ck, 3)
        xt = jax.random.normal(k1, (2, 3, 10, 10, cin), jnp.float32)
        wt_ = jax.random.normal(k2, (cout, cin) + ksz, jnp.float32) * 0.05
        sc = jnp.ones((cout,), jnp.float32)
        sh_ = jnp.zeros((cout,), jnp.float32)
        got = conv3d_bn_relu(xt, wt_, sc, sh_, stride=st, padding=pad)
        got = got.astype(jnp.float32)
        ref = _conv_bn_relu_reference(xt, wt_, sc, sh_, st, pad)
        err = float(jnp.max(jnp.abs(got - ref)) / (jnp.max(jnp.abs(ref)) + 1e-6))
        assert err < 2e-2, ("conv mismatch", st, pad, err)

    # Small NCDHW input: batch=2, C=3, D=3, H=W=16
    x = jax.random.normal(xkey, (2, 3, 3, 16, 16), jnp.float32)

    out = jax.jit(forward)(params, x)
    out = jax.block_until_ready(out)

    assert out.shape == (2, 20), out.shape
    assert bool(jnp.all(jnp.isfinite(out)))
    print("KERNEL_OK")
</pallas_src>

<mosaic_0001>
module attributes {stable_mosaic.version = 11 : i64} {
  func.func @_conv_kernel(%arg0: i32, %arg1: i32, %arg2: i32, %arg3: memref<1x1x20x48xbf16, #tpu.memory_space<vmem>>, %arg4: memref<12x48x128xbf16, #tpu.memory_space<vmem>>, %arg5: memref<1x128xf32, #tpu.memory_space<vmem>>, %arg6: memref<1x128xf32, #tpu.memory_space<vmem>>, %arg7: memref<1x1x12x128xbf16, #tpu.memory_space<vmem>>, %arg8: memref<12x128xf32, #tpu.memory_space<vmem>>) attributes {dimension_semantics = [#tpu.dimension_semantics<parallel>, #tpu.dimension_semantics<parallel>, #tpu.dimension_semantics<arbitrary>], iteration_bounds = array<i64: 2, 3, 3>, scalar_prefetch = 0 : i64, scratch_operands = 1 : i64, tpu.core_type = #tpu.core_type<tc>, window_params = [{transform_indices = @transform_0, window_bounds = array<i64: 1, 1, 20, 48>}, {pipeline_mode = #tpu.pipeline_mode<synchronous>, transform_indices = @transform_1, window_bounds = array<i64: 12, 48, 128>}, {pipeline_mode = #tpu.pipeline_mode<synchronous>, transform_indices = @transform_2, window_bounds = array<i64: 1, 128>}, {pipeline_mode = #tpu.pipeline_mode<synchronous>, transform_indices = @transform_3, window_bounds = array<i64: 1, 128>}, {transform_indices = @transform_4, window_bounds = array<i64: 1, 1, 12, 128>}]} {
    %c0 = arith.constant 0 : index
    %c0_0 = arith.constant 0 : index
    %c0_1 = arith.constant 0 : index
    %c0_2 = arith.constant 0 : index
    %0 = vector.load %arg3[%c0, %c0_0, %c0_1, %c0_2] : memref<1x1x20x48xbf16, #tpu.memory_space<vmem>>, vector<1x1x12x48xbf16>
    %1 = vector.shape_cast %0 : vector<1x1x12x48xbf16> to vector<12x48xbf16>
    %c4_i32 = arith.constant 4 : i32
    %2 = arith.muli %arg2, %c4_i32 : i32
    %3 = arith.index_cast %2 : i32 to index
    %c0_3 = arith.constant 0 : index
    %c0_4 = arith.constant 0 : index
    %4 = vector.load %arg4[%3, %c0_3, %c0_4] : memref<12x48x128xbf16, #tpu.memory_space<vmem>>, vector<1x48x128xbf16>
    %5 = vector.shape_cast %4 : vector<1x48x128xbf16> to vector<48x128xbf16>
    %cst = arith.constant dense<0.000000e+00> : vector<12x128xf32>
    %6 = tpu.matmul %1, %5, %cst {dimension_numbers = #tpu.dot_dimension_numbers<[1], [0], [0], [1], [0, 0, 1, 1], [], []>} : vector<12x48xbf16>, vector<48x128xbf16>, vector<12x128xf32> -> vector<12x128xf32>
    %c0_i32 = arith.constant 0 : i32
    %7 = arith.cmpi eq, %arg2, %c0_i32 : i32
    %8 = arith.extui %7 : i1 to i32
    %c0_i32_5 = arith.constant 0 : i32
    %9 = arith.cmpi ne, %8, %c0_i32_5 : i32
    scf.if %9 {
      %c0_43 = arith.constant 0 : index
      %c0_44 = arith.constant 0 : index
      %49 = vector.load %arg8[%c0_43, %c0_44] : memref<12x128xf32, #tpu.memory_space<vmem>>, vector<12x128xf32>
      tpu.vector_store %arg8[%c0_43, %c0_44], %6 {strides = array<i32>} : memref<12x128xf32, #tpu.memory_space<vmem>>, vector<12x128xf32>,
    } else {
    }
    %c0_i32_6 = arith.constant 0 : i32
    %10 = arith.cmpi sgt, %arg2, %c0_i32_6 : i32
    %11 = arith.extui %10 : i1 to i32
    %c0_i32_7 = arith.constant 0 : i32
    %12 = arith.cmpi ne, %11, %c0_i32_7 : i32
    scf.if %12 {
      %c0_43 = arith.constant 0 : index
      %c0_44 = arith.constant 0 : index
      %49 = vector.load %arg8[%c0_43, %c0_44] : memref<12x128xf32, #tpu.memory_space<vmem>>, vector<12x128xf32>
      %50 = arith.addf %49, %6 : vector<12x128xf32>
      %c0_45 = arith.constant 0 : index
      %c0_46 = arith.constant 0 : index
      %51 = vector.load %arg8[%c0_45, %c0_46] : memref<12x128xf32, #tpu.memory_space<vmem>>, vector<12x128xf32>
      tpu.vector_store %arg8[%c0_45, %c0_46], %50 {strides = array<i32>} : memref<12x128xf32, #tpu.memory_space<vmem>>, vector<12x128xf32>,
    } else {
    }
    %c0_8 = arith.constant 0 : index
    %c0_9 = arith.constant 0 : index
    %c1 = arith.constant 1 : index
    %c0_10 = arith.constant 0 : index
    %13 = vector.load %arg3[%c0_8, %c0_9, %c1, %c0_10] : memref<1x1x20x48xbf16, #tpu.memory_space<vmem>>, vector<1x1x12x48xbf16>
    %14 = vector.shape_cast %13 : vector<1x1x12x48xbf16> to vector<12x48xbf16>
    %c0_11 = arith.constant 0 : index
    %c0_12 = arith.constant 0 : index
    %15 = vector.load %arg8[%c0_11, %c0_12] : memref<12x128xf32, #tpu.memory_space<vmem>>, vector<12x128xf32>
    %c4_i32_13 = arith.constant 4 : i32
    %16 = arith.muli %arg2, %c4_i32_13 : i32
    %c1_i32 = arith.constant 1 : i32
    %17 = arith.addi %16, %c1_i32 : i32
    %18 = arith.index_cast %17 : i32 to index
    %c0_14 = arith.constant 0 : index
    %c0_15 = arith.constant 0 : index
    %19 = vector.load %arg4[%18, %c0_14, %c0_15] : memref<12x48x128xbf16, #tpu.memory_space<vmem>>, vector<1x48x128xbf16>
    %20 = vector.shape_cast %19 : vector<1x48x128xbf16> to vector<48x128xbf16>
    %cst_16 = arith.constant dense<0.000000e+00> : vector<12x128xf32>
    %21 = tpu.matmul %14, %20, %cst_16 {dimension_numbers = #tpu.dot_dimension_numbers<[1], [0], [0], [1], [0, 0, 1, 1], [], []>} : vector<12x48xbf16>, vector<48x128xbf16>, vector<12x128xf32> -> vector<12x128xf32>
    %22 = arith.addf %15, %21 : vector<12x128xf32>
    %c0_17 = arith.constant 0 : index
    %c0_18 = arith.constant 0 : index
    %23 = vector.load %arg8[%c0_17, %c0_18] : memref<12x128xf32, #tpu.memory_space<vmem>>, vector<12x128xf32>
    tpu.vector_store %arg8[%c0_17, %c0_18], %22 {strides = array<i32>} : memref<12x128xf32, #tpu.memory_space<vmem>>, vector<12x128xf32>,
    %c0_19 = arith.constant 0 : index
    %c0_20 = arith.constant 0 : index
    %c4 = arith.constant 4 : index
    %c0_21 = arith.constant 0 : index
    %24 = vector.load %arg3[%c0_19, %c0_20, %c4, %c0_21] : memref<1x1x20x48xbf16, #tpu.memory_space<vmem>>, vector<1x1x12x48xbf16>
    %25 = vector.shape_cast %24 : vector<1x1x12x48xbf16> to vector<12x48xbf16>
    %c0_22 = arith.constant 0 : index
    %c0_23 = arith.constant 0 : index
    %26 = vector.load %arg8[%c0_22, %c0_23] : memref<12x128xf32, #tpu.memory_space<vmem>>, vector<12x128xf32>
    %c4_i32_24 = arith.constant 4 : i32
    %27 = arith.muli %arg2, %c4_i32_24 : i32
    %c2_i32 = arith.constant 2 : i32
    %28 = arith.addi %27, %c2_i32 : i32
    %29 = arith.index_cast %28 : i32 to index
    %c0_25 = arith.constant 0 : index
    %c0_26 = arith.constant 0 : index
    %30 = vector.load %arg4[%29, %c0_25, %c0_26] : memref<12x48x128xbf16, #tpu.memory_space<vmem>>, vector<1x48x128xbf16>
    %31 = vector.shape_cast %30 : vector<1x48x128xbf16> to vector<48x128xbf16>
    %cst_27 = arith.constant dense<0.000000e+00> : vector<12x128xf32>
    %32 = tpu.matmul %25, %31, %cst_27 {dimension_numbers = #tpu.dot_dimension_numbers<[1], [0], [0], [1], [0, 0, 1, 1], [], []>} : vector<12x48xbf16>, vector<48x128xbf16>, vector<12x128xf32> -> vector<12x128xf32>
    %33 = arith.addf %26, %32 : vector<12x128xf32>
    %c0_28 = arith.constant 0 : index
    %c0_29 = arith.constant 0 : index
    %34 = vector.load %arg8[%c0_28, %c0_29] : memref<12x128xf32, #tpu.memory_space<vmem>>, vector<12x128xf32>
    tpu.vector_store %arg8[%c0_28, %c0_29], %33 {strides = array<i32>} : memref<12x128xf32, #tpu.memory_space<vmem>>, vector<12x128xf32>,
    %c0_30 = arith.constant 0 : index
    %c0_31 = arith.constant 0 : index
    %c5 = arith.constant 5 : index
    %c0_32 = arith.constant 0 : index
    %35 = vector.load %arg3[%c0_30, %c0_31, %c5, %c0_32] : memref<1x1x20x48xbf16, #tpu.memory_space<vmem>>, vector<1x1x12x48xbf16>
    %36 = vector.shape_cast %35 : vector<1x1x12x48xbf16> to vector<12x48xbf16>
    %c0_33 = arith.constant 0 : index
    %c0_34 = arith.constant 0 : index
    %37 = vector.load %arg8[%c0_33, %c0_34] : memref<12x128xf32, #tpu.memory_space<vmem>>, vector<12x128xf32>
    %c4_i32_35 = arith.constant 4 : i32
    %38 = arith.muli %arg2, %c4_i32_35 : i32
    %c3_i32 = arith.constant 3 : i32
    %39 = arith.addi %38, %c3_i32 : i32
    %40 = arith.index_cast %39 : i32 to index
    %c0_36 = arith.constant 0 : index
    %c0_37 = arith.constant 0 : index
    %41 = vector.load %arg4[%40, %c0_36, %c0_37] : memref<12x48x128xbf16, #tpu.memory_space<vmem>>, vector<1x48x128xbf16>
    %42 = vector.shape_cast %41 : vector<1x48x128xbf16> to vector<48x128xbf16>
    %cst_38 = arith.constant dense<0.000000e+00> : vector<12x128xf32>
    %43 = tpu.matmul %36, %42, %cst_38 {dimension_numbers = #tpu.dot_dimension_numbers<[1], [0], [0], [1], [0, 0, 1, 1], [], []>} : vector<12x48xbf16>, vector<48x128xbf16>, vector<12x128xf32> -> vector<12x128xf32>
    %44 = arith.addf %37, %43 : vector<12x128xf32>
    %c0_39 = arith.constant 0 : index
    %c0_40 = arith.constant 0 : index
    %45 = vector.load %arg8[%c0_39, %c0_40] : memref<12x128xf32, #tpu.memory_space<vmem>>, vector<12x128xf32>
    tpu.vector_store %arg8[%c0_39, %c0_40], %44 {strides = array<i32>} : memref<12x128xf32, #tpu.memory_space<vmem>>, vector<12x128xf32>,
    %c2_i32_41 = arith.constant 2 : i32
    %46 = arith.cmpi eq, %arg2, %c2_i32_41 : i32
    %47 = arith.extui %46 : i1 to i32
    %c0_i32_42 = arith.constant 0 : i32
    %48 = arith.cmpi ne, %47, %c0_i32_42 : i32
    scf.if %48 {
      %c0_43 = arith.constant 0 : index
      %c0_44 = arith.constant 0 : index
      %49 = vector.load %arg8[%c0_43, %c0_44] : memref<12x128xf32, #tpu.memory_space<vmem>>, vector<12x128xf32>
      %c0_45 = arith.constant 0 : index
      %c0_46 = arith.constant 0 : index
      %50 = vector.load %arg5[%c0_45, %c0_46] : memref<1x128xf32, #tpu.memory_space<vmem>>, vector<1x128xf32>
      %51 = vector.broadcast %50 : vector<1x128xf32> to vector<12x128xf32>
      %52 = arith.mulf %49, %51 : vector<12x128xf32>
      %c0_47 = arith.constant 0 : index
      %c0_48 = arith.constant 0 : index
      %53 = vector.load %arg6[%c0_47, %c0_48] : memref<1x128xf32, #tpu.memory_space<vmem>>, vector<1x128xf32>
      %54 = vector.broadcast %53 : vector<1x128xf32> to vector<12x128xf32>
      %55 = arith.addf %52, %54 : vector<12x128xf32>
      %cst_49 = arith.constant 0.000000e+00 : f32
      %56 = vector.broadcast %cst_49 : f32 to vector<12x128xf32>
      %57 = arith.maximumf %55, %56 : vector<12x128xf32>
      %58 = arith.truncf %57 : vector<12x128xf32> to vector<12x128xbf16>
      %c0_50 = arith.constant 0 : index
      %c0_51 = arith.constant 0 : index
      %c0_52 = arith.constant 0 : index
      %c0_53 = arith.constant 0 : index
      %59 = vector.load %arg7[%c0_50, %c0_51, %c0_52, %c0_53] : memref<1x1x12x128xbf16, #tpu.memory_space<vmem>>, vector<1x1x12x128xbf16>
      %60 = vector.shape_cast %59 : vector<1x1x12x128xbf16> to vector<12x128xbf16>
      %61 = vector.shape_cast %58 : vector<12x128xbf16> to vector<1x1x12x128xbf16>
      tpu.vector_store %arg7[%c0_50, %c0_51, %c0_52, %c0_53], %61 {strides = array<i32>} : memref<1x1x12x128xbf16, #tpu.memory_space<vmem>>, vector<1x1x12x128xbf16>,
    } else {
    }
    return
  }
  func.func @transform_0(%arg0: i32, %arg1: i32, %arg2: i32) -> (i32, i32, i32, i32) {
    %0 = arith.addi %arg1, %arg2 : i32
    %c0_i32 = arith.constant 0 : i32
    %c0_i32_0 = arith.constant 0 : i32
    %c0_i32_1 = arith.constant 0 : i32
    return %arg0, %0, %c0_i32, %c0_i32_0 : i32, i32, i32, i32
  }
  func.func @transform_1(%arg0: i32, %arg1: i32, %arg2: i32) -> (i32, i32, i32) {
    %c0_i32 = arith.constant 0 : i32
    %c0_i32_0 = arith.constant 0 : i32
    %c0_i32_1 = arith.constant 0 : i32
    %c0_i32_2 = arith.constant 0 : i32
    return %c0_i32, %c0_i32_0, %c0_i32_1 : i32, i32, i32
  }
  func.func @transform_2(%arg0: i32, %arg1: i32, %arg2: i32) -> (i32, i32) {
    %c0_i32 = arith.constant 0 : i32
    %c0_i32_0 = arith.constant 0 : i32
    %c0_i32_1 = arith.constant 0 : i32
    return %c0_i32, %c0_i32_0 : i32, i32
  }
  func.func @transform_3(%arg0: i32, %arg1: i32, %arg2: i32) -> (i32, i32) {
    %c0_i32 = arith.constant 0 : i32
    %c0_i32_0 = arith.constant 0 : i32
    %c0_i32_1 = arith.constant 0 : i32
    return %c0_i32, %c0_i32_0 : i32, i32
  }
  func.func @transform_4(%arg0: i32, %arg1: i32, %arg2: i32) -> (i32, i32, i32, i32) {
    %c0_i32 = arith.constant 0 : i32
    %c0_i32_0 = arith.constant 0 : i32
    %c0_i32_1 = arith.constant 0 : i32
    return %arg0, %arg1, %c0_i32, %c0_i32_0 : i32, i32, i32, i32
  }
}

</mosaic_0001>

<llo_original>
// kernel: tpu_custom_call.1
$region0: #{tpu_custom_call.1}
  #allocation0 [shape = 'u32[]', space=smem, size = 0x4, offset = 0x4, fixed_abs, tag = 'smem constant byte address 0x4 - core index']
  #allocation1 [shape = 'u32[144,128]{1,0:T(1,128)}', space=vmem, size = 0x12000, scoped, tag = 'internal scratch']
  #allocation2 [shape = 'f32[12,128]{1,0:T(8,128)}', space=vmem, size = 0x2000, scoped, tag = 'scratch operand']
  %s0 = inlined_call_operand.vmem [shape: bf16[2,5,20,48], index: 0, kind: input, shape index: {}]
  %s1 = inlined_call_operand.hbm [shape: bf16[12,48,128], index: 1, kind: input, shape index: {}]
  %s2 = inlined_call_operand.vmem [shape: f32[1,128], index: 2, kind: input, shape index: {}]
  %s3 = inlined_call_operand.vmem [shape: f32[1,128], index: 3, kind: input, shape index: {}]
  %s4 = inlined_call_operand.vmem [shape: bf16[2,3,12,128], index: 4, kind: output, shape index: {}]
  %s5 = sld [smem:[#allocation0]]
  $region65: #{tpu_custom_call.1} parent=0
    _
  %s7 = ssub.s32 1, %s5
  %s8 = scalar_select 0, %s7, %s5
  $region1: #{tpu_custom_call.1} parent=0
    #allocation3 [shape = 'u8[147456]{0}', space=vmem, size = 0x24000, scoped, tag = 'input window, operand 1, single buffered']
    #allocation4 [shape = 's32[2]{0}', space=sflag, size = 0x8, scoped, tag = 'scoped memory for tpu_custom_call.1']
    %9 = vsyncpa [#allocation4], 0
    loop: start=0, step=1, limit=20
    $region2: #{tpu_custom_call.1} parent=1 // loop_pre_header
      _
    $region3: #{tpu_custom_call.1} parent=1 // loop_header
      %s11 = sphi 0, %s15
      %p12 = scmp.ge.s32.totalorder %s11, 20
      %s18 = sphi 0, %s37
      %s19 = sphi 0, %s33
      %s20 = sphi 0, %s29
      %s21 = sphi 0, %s18
      %s22 = sphi 0, %s19
      %s23 = sphi 0, %s20
      %s24 = sphi 0, %s21
      %s25 = sphi 0, %s22
      %s26 = sphi 0, %s23
      %s44 = sphi 0, %s46
      %s47 = sphi 0, %s44
      %s48 = sphi 0, %s47
      %s64 = sphi 0, %s48
      %s68 = sphi 0, %s68
      %s70 = sphi 0, %s68
      %s71 = sphi 0, %s70
      %s85 = sphi 0, %s71
      %s89 = sphi 0, %s89
      %s91 = sphi 0, %s89
      %s92 = sphi 0, %s91
      %s106 = sphi 0, %s92
      %s110 = sphi 0, %s110
      %s112 = sphi 0, %s110
      %s113 = sphi 0, %s112
      %s127 = sphi 0, %s113
      %s135 = sphi 0, %s137
      %s138 = sphi 0, %s135
      %s139 = sphi 0, %s138
      %s155 = sphi 0, %s139
    $region4: #{tpu_custom_call.1} parent=1 // loop_header_branch
      %14 = sbr.rel (%p12) target = $region8
    $region5: #{tpu_custom_call.1} parent=1 // loop_body
      %s16 = ssub.s32 %s11, 1
      %s17 = ssub.s32 %s11, 2
      %s27 = sadd.s32 1, %s20
      %p28 = scmp.ge.s32.totalorder %s27, 3
      %s29 = scalar_select %p28, 0, %s27
      %s30 = sadd.s32 1, %s19
      %s31 = scalar_select %p28, %s30, %s19
      %p32 = scmp.ge.s32.totalorder %s31, 3
      %s33 = scalar_select %p32, 0, %s31
      %s34 = sadd.s32 1, %s18
      %s35 = scalar_select %p32, %s34, %s18
      %p36 = scmp.ge.s32.totalorder %s35, 2
      %s37 = scalar_select %p36, 0, %s35
      %s38 = sadd.s32 %s19, %s20
      %s39 = sadd.s32 %s33, %s29
      %s40 = ssub.s32 %s18, %s37
      %s41 = ssub.s32 %s38, %s39
      %s42 = sor.u32 %s40, %s41
      %p43 = scmp.eq.s32.totalorder %s42, 0
      %s45 = sadd.s32 %s44, 1
      %s46 = scalar_select %p43, %s44, %s45
      %p49 = pneg %p43
      %p50 = scmp.eq.s32.totalorder %s11, 17
      %p51 = por %p49, %p50
      %p52 = scmp.ne.s32.totalorder %s44, %s47
      %p53 = scmp.eq.s32.totalorder %s11, 0
      %p54 = por %p52, %p53
      %p55 = scmp.ne.s32.totalorder %s44, %s47
      %p56 = scmp.eq.s32.totalorder %s16, 17
      %p57 = por %p55, %p56
      %p58 = scmp.ne.s32.totalorder %s47, %s48
      %p59 = scmp.eq.s32.totalorder %s16, 0
      %p60 = por %p58, %p59
      %p61 = scmp.ne.s32.totalorder %s47, %s48
      %p62 = scmp.eq.s32.totalorder %s17, 17
      %p63 = por %p61, %p62
      %p65 = scmp.ne.s32.totalorder %s48, %s64
      %p66 = scmp.eq.s32.totalorder %s17, 0
      %p67 = por %p65, %p66
      %s69 = sadd.s32 %s68, 1
      %p72 = scmp.eq.s32.totalorder %s11, 17
      %p73 = scmp.ne.s32.totalorder %s68, %s70
      %p74 = scmp.eq.s32.totalorder %s11, 0
      %p75 = por %p73, %p74
      %p76 = scmp.ne.s32.totalorder %s68, %s70
      %p77 = scmp.eq.s32.totalorder %s16, 17
      %p78 = por %p76, %p77
      %p79 = scmp.ne.s32.totalorder %s70, %s71
      %p80 = scmp.eq.s32.totalorder %s16, 0
      %p81 = por %p79, %p80
      %p82 = scmp.ne.s32.totalorder %s70, %s71
      %p83 = scmp.eq.s32.totalorder %s17, 17
      %p84 = por %p82, %p83
      %p86 = scmp.ne.s32.totalorder %s71, %s85
      %p87 = scmp.eq.s32.totalorder %s17, 0
      %p88 = por %p86, %p87
      %s90 = sadd.s32 %s89, 1
      %p93 = scmp.eq.s32.totalorder %s11, 17
      %p94 = scmp.ne.s32.totalorder %s89, %s91
      %p95 = scmp.eq.s32.totalorder %s11, 0
      %p96 = por %p94, %p95
      %p97 = scmp.ne.s32.totalorder %s89, %s91
      %p98 = scmp.eq.s32.totalorder %s16, 17
      %p99 = por %p97, %p98
      %p100 = scmp.ne.s32.totalorder %s91, %s92
      %p101 = scmp.eq.s32.totalorder %s16, 0
      %p102 = por %p100, %p101
      %p103 = scmp.ne.s32.totalorder %s91, %s92
      %p104 = scmp.eq.s32.totalorder %s17, 17
      %p105 = por %p103, %p104
      %p107 = scmp.ne.s32.totalorder %s92, %s106
      %p108 = scmp.eq.s32.totalorder %s17, 0
      %p109 = por %p107, %p108
      %s111 = sadd.s32 %s110, 1
      %p114 = scmp.eq.s32.totalorder %s11, 17
      %p115 = scmp.ne.s32.totalorder %s110, %s112
      %p116 = scmp.eq.s32.totalorder %s11, 0
      %p117 = por %p115, %p116
      %p118 = scmp.ne.s32.totalorder %s110, %s112
      %p119 = scmp.eq.s32.totalorder %s16, 17
      %p120 = por %p118, %p119
      %p121 = scmp.ne.s32.totalorder %s112, %s113
      %p122 = scmp.eq.s32.totalorder %s16, 0
      %p123 = por %p121, %p122
      %p124 = scmp.ne.s32.totalorder %s112, %s113
      %p125 = scmp.eq.s32.totalorder %s17, 17
      %p126 = por %p124, %p125
      %p128 = scmp.ne.s32.totalorder %s113, %s127
      %p129 = scmp.eq.s32.totalorder %s17, 0
      %p130 = por %p128, %p129
      %s131 = ssub.s32 %s18, %s37
      %s132 = ssub.s32 %s19, %s33
      %s133 = sor.u32 %s131, %s132
      %p134 = scmp.eq.s32.totalorder %s133, 0
      %s136 = sadd.s32 %s135, 1
      %s137 = scalar_select %p134, %s135, %s136
      %p140 = pneg %p134
      %p141 = scmp.eq.s32.totalorder %s11, 17
      %p142 = por %p140, %p141
      %p143 = scmp.ne.s32.totalorder %s135, %s138
      %p144 = scmp.eq.s32.totalorder %s11, 0
      %p145 = por %p143, %p144
      %p146 = scmp.ne.s32.totalorder %s135, %s138
      %p147 = scmp.eq.s32.totalorder %s16, 17
      %p148 = por %p146, %p147
      %p149 = scmp.ne.s32.totalorder %s138, %s139
      %p150 = scmp.eq.s32.totalorder %s16, 0
      %p151 = por %p149, %p150
      %p152 = scmp.ne.s32.totalorder %s138, %s139
      %p153 = scmp.eq.s32.totalorder %s17, 17
      %p154 = por %p152, %p153
      %p156 = scmp.ne.s32.totalorder %s139, %s155
      %p157 = scmp.eq.s32.totalorder %s17, 0
      %p158 = por %p156, %p157
      %p159 = scmp.le.s32.totalorder 1, %s11
      %p160 = scmp.lt.s32.totalorder %s11, 19
      %p161 = pnand %p159, %p160
      %p162 = pneg %p161
      // Predicated region
      $region9: #{tpu_custom_call.1} parent=5 // pred_check
        _
      $region10: #{tpu_custom_call.1} parent=5 // pred_check_branch
        %164 = sbr.rel (%p161) target = $region12
      $region11: #{tpu_custom_call.1} parent=5 // pred_region
        %s165 = ssub.s32 %s11, 1
        // Predicated region
        $region13: #{tpu_custom_call.1} parent=11 // pred_check
          %p166 = pneg %p81
        $region14: #{tpu_custom_call.1} parent=11 // pred_check_branch
          %168 = sbr.rel (%p166) target = $region16
        $region15: #{tpu_custom_call.1} parent=11 // pred_region
          %s170 = ssub.s32 4608, 4608
          %171 = vsyncadd [#allocation4], %s170
          %s172 = sshll.u32 [#allocation3], 4
          %s173 = int_to_ptr.vmem [resolvable:$true] %s172
          %178 = dma.hbm_to_vmem [thread:$0]  %s1, 4608, %s173, [#allocation4], 64, 64, 4
        $region16: #{tpu_custom_call.1} parent=11 // pred_fallthru
          _
        // Predicated region
        $region17: #{tpu_custom_call.1} parent=11 // pred_check
          %p179 = pneg %p102
        $region18: #{tpu_custom_call.1} parent=11 // pred_check_branch
          %181 = sbr.rel (%p179) target = $region20
        $region19: #{tpu_custom_call.1} parent=11 // pred_region
          _
        $region20: #{tpu_custom_call.1} parent=11 // pred_fallthru
          _
        // Predicated region
        $region21: #{tpu_custom_call.1} parent=11 // pred_check
          %p182 = pneg %p123
        $region22: #{tpu_custom_call.1} parent=11 // pred_check_branch
          %184 = sbr.rel (%p182) target = $region24
        $region23: #{tpu_custom_call.1} parent=11 // pred_region
          _
        $region24: #{tpu_custom_call.1} parent=11 // pred_fallthru
          _
      $region12: #{tpu_custom_call.1} parent=5 // pred_fallthru
        _
      %p185 = scmp.lt.s32.totalorder %s11, 18
      // Predicated region
      $region25: #{tpu_custom_call.1} parent=5 // pred_check
        %p186 = pneg %p185
      $region26: #{tpu_custom_call.1} parent=5 // pred_check_branch
        %188 = sbr.rel (%p186) target = $region28
      $region27: #{tpu_custom_call.1} parent=5 // pred_region
        // Predicated region
        $region29: #{tpu_custom_call.1} parent=27 // pred_check
          %p189 = pneg %p54
        $region30: #{tpu_custom_call.1} parent=27 // pred_check_branch
          %191 = sbr.rel (%p189) target = $region32
        $region31: #{tpu_custom_call.1} parent=27 // pred_region
          %s192 = sadd.s32 %s19, %s20
          %p193 = scmp.lt.s32.totalorder %s18, 1
          %s194 = scalar_select %p193, %s18, 1
          %p195 = scmp.lt.s32.totalorder %s192, 4
          %s196 = scalar_select %p195, %s192, 4
          %s197 = smul.addr %s196, 3
          %s198 = smul.addr %s194, 15
          %s199 = sadd.s32 %s197, %s198
          %s200 = smul.addr %s199, 4
          %s201 = scalar_lea.vmem %s0, %s200
          %s202 = sadd.s32 %s19, %s20
        $region32: #{tpu_custom_call.1} parent=27 // pred_fallthru
          _
      $region28: #{tpu_custom_call.1} parent=5 // pred_fallthru
        _
      %p203 = scmp.le.s32.totalorder 1, %s11
      %p204 = scmp.lt.s32.totalorder %s11, 19
      %p205 = pnand %p203, %p204
      %p206 = pneg %p205
      // Predicated region
      $region33: #{tpu_custom_call.1} parent=5 // pred_check
        _
      $region34: #{tpu_custom_call.1} parent=5 // pred_check_branch
        %208 = sbr.rel (%p205) target = $region36
      $region35: #{tpu_custom_call.1} parent=5 // pred_region
        %s209 = ssub.s32 %s11, 1
        // Predicated region
        $region37: #{tpu_custom_call.1} parent=35 // pred_check
          %p210 = pneg %p81
        $region38: #{tpu_custom_call.1} parent=35 // pred_check_branch
          %212 = sbr.rel (%p210) target = $region40
        $region39: #{tpu_custom_call.1} parent=35 // pred_region
          %213 = dma.done [#allocation4], 4608
        $region40: #{tpu_custom_call.1} parent=35 // pred_fallthru
          _
        %s214 = sadd.s32 %s22, %s23
        %p215 = scmp.lt.s32.totalorder %s21, 1
        %s216 = scalar_select %p215, %s21, 1
        %p217 = scmp.lt.s32.totalorder %s214, 4
        %s218 = scalar_select %p217, %s214, 4
        %s219 = smul.addr %s218, 3
        %s220 = smul.addr %s216, 15
        %s221 = sadd.s32 %s219, %s220
        %s222 = smul.addr %s221, 4
        %s223 = scalar_lea.vmem %s0, %s222
        %p224 = pneg %p60
        %p225 = pneg %p57
        %p226 = pneg %p81
        %p227 = pneg %p78
        %p228 = pneg %p102
        %p229 = pneg %p99
        %p230 = pneg %p123
        %p231 = pneg %p120
        %p232 = pneg %p151
        %p233 = pneg %p148
        %p234 = scmp.lt.s32.totalorder %s21, 1
        %s235 = scalar_select %p234, %s21, 1
        %p236 = scmp.lt.s32.totalorder %s22, 2
        %s237 = scalar_select %p236, %s22, 2
        %s238 = smul.addr %s237, 2
        %s239 = smul.addr %s235, 6
        %s240 = sadd.s32 %s238, %s239
        %s241 = smul.addr %s240, 4
        %s242 = scalar_lea.vmem %s4, %s241
        %s243 = sadd.s32 %s22, %s23
        %p244 = scmp.lt.s32.totalorder %s21, 1
        %s245 = scalar_select %p244, %s21, 1
        %p246 = scmp.lt.s32.totalorder %s243, 4
        %s247 = scalar_select %p246, %s243, 4
        %s248 = smul.addr %s247, 3
        %s249 = smul.addr %s245, 15
        %s250 = sadd.s32 %s248, %s249
        %s251 = smul.addr %s250, 4
        %s252 = scalar_lea.vmem %s0, %s251
        %s253 = sadd.s32 %s22, %s23
        %p254 = scmp.lt.s32.totalorder %s21, 1
        %s255 = scalar_select %p254, %s21, 1
        %p256 = scmp.lt.s32.totalorder %s22, 2
        %s257 = scalar_select %p256, %s22, 2
        %s258 = smul.addr %s257, 2
        %s259 = smul.addr %s255, 6
        %s260 = sadd.s32 %s258, %s259
        %s261 = smul.addr %s260, 4
        %s262 = scalar_lea.vmem %s4, %s261
        %v264 = vld [vmem:[%s252] sm:$0xf]
        %v265 = vld [vmem:[%s252 + $0x4] sm:$0x3]
        %s266 = smul.u32 %s23, 4
        %s267 = smul.u32 %s266, 6
        %s268 = smul.addr %s267, 4
        %s269 = scalar_lea.vmem [#allocation3], %s268
        %v270 = vld [vmem:[%s269] sm:$0xf]
        %v271 = vld [vmem:[%s269 + $0x4] sm:$0xf]
        %v272 = vld [vmem:[%s269 + $0x8] sm:$0xf]
        %v273 = vld [vmem:[%s269 + $0xc] sm:$0xf]
        %v274 = vld [vmem:[%s269 + $0x10] sm:$0xf]
        %v275 = vld [vmem:[%s269 + $0x14] sm:$0xf]
        %v278 = vunpack.c.l.b16 %v264
        %v279 = vunpack.c.l.b16 %v265
        %v280 = vpack.c.b16 %v279, %v278
        %v287 = vunpack.c.l.b16 %v270
        %v288 = vunpack.c.l.b16 %v271
        %v289 = vunpack.c.l.b16 %v272
        %v290 = vunpack.c.l.b16 %v273
        %v291 = vunpack.c.l.b16 %v274
        %v292 = vunpack.c.l.b16 %v275
        %v293 = vpack.c.b16 %v288, %v287
        %v294 = vpack.c.b16 %v290, %v289
        %v295 = vpack.c.b16 %v292, %v291
        %vm299 = vcmask 392192
        %v301 = vsel %vm299, %v280, 0
        %303 = vmatprep.subr.bf16.mxu0 0
        %304 = vmatpush1.bf16.msra.mxu0 0
        %305 = vmatprep.subr.bf16.mxu0 0
        %306 = vmatpush1.bf16.msra.mxu0 0
        %307 = vmatprep.subr.bf16.mxu0 0
        %308 = vmatpush1.bf16.msra.mxu0 0
        %309 = vmatprep.subr.bf16.mxu0 0
        %310 = vmatpush1.bf16.msra.mxu0 0
        %311 = vmatprep.subr.bf16.mxu0 0
        %312 = vmatpush1.bf16.msra.mxu0 0
        %313 = vmatprep.subr.bf16.mxu0 0
        %314 = vmatpush1.bf16.msra.mxu0 %v295
        %315 = vmatprep.subr.bf16.mxu0 0
        %316 = vmatpush1.bf16.msra.mxu0 %v294
        %317 = vmatprep.subr.bf16.mxu0 0
        %318 = vmatpush1.bf16.msra.mxu0 %v293
        %319 = vmatprep.subr.bf16.mxu0 0
        %320 = vmatpush2.bf16.msra.mxu0 0
        %321 = vmatprep.subr.bf16.mxu0 0
        %322 = vmatpush2.bf16.msra.mxu0 0
        %323 = vmatprep.subr.bf16.mxu0 0
        %324 = vmatpush2.bf16.msra.mxu0 0
        %325 = vmatprep.subr.bf16.mxu0 0
        %326 = vmatpush2.bf16.msra.mxu0 0
        %327 = vmatprep.subr.bf16.mxu0 0
        %328 = vmatpush2.bf16.msra.mxu0 0
        %329 = vmatprep.subr.bf16.mxu0 0
        %330 = vmatpush2.bf16.msra.mxu0 0
        %331 = vmatprep.subr.bf16.mxu0 0
        %332 = vmatpush2.bf16.msra.mxu0 0
        %333 = vmatprep.subr.bf16.mxu0 0
        %334 = vmatpush2.bf16.msra.mxu0 0
        %335 = vmatprep.mubr.bf16.mxu0 0
        %336 = vmatmul.mubr.bf16.gmra.mxu0 %v301
        %v337 = vpop.f32.mrf.mxu0
        %v338 = vadd.f32 0.0, %v337
        %v339 = vpop.f32.mrf.mxu0
        %v340 = vpop.f32.mrf.mxu0
        %v341 = vadd.f32 0.0, %v340
        %v342 = vpop.f32.mrf.mxu0
        %343 = vdwg.mxu0
        %p344 = scmp.eq.s32.totalorder %s23, 0
        // Predicated region
        $region41: #{tpu_custom_call.1} parent=35 // pred_check
          %p345 = pneg %p344
        $region42: #{tpu_custom_call.1} parent=35 // pred_check_branch
          %347 = sbr.rel (%p345) target = $region44
        $region43: #{tpu_custom_call.1} parent=35 // pred_region
          %348 = vst [vmem:[#allocation2] sm:$0xff] %v338
          %349 = vst [vmem:[#allocation2 + $0x8] sm:$0xf] %v341
        $region44: #{tpu_custom_call.1} parent=35 // pred_fallthru
          _
        %p350 = scmp.gt.s32.totalorder %s23, 0
        // Predicated region
        $region45: #{tpu_custom_call.1} parent=35 // pred_check
          %p351 = pneg %p350
        $region46: #{tpu_custom_call.1} parent=35 // pred_check_branch
          %353 = sbr.rel (%p351) target = $region48
        $region47: #{tpu_custom_call.1} parent=35 // pred_region
          %v354 = vld [vmem:[#allocation2] sm:$0xff]
          %v355 = vld [vmem:[#allocation2 + $0x8] sm:$0xf]
          %v356 = vadd.f32 %v354, %v338
          %v357 = vadd.f32 %v355, %v341
          %358 = vst [vmem:[#allocation2] sm:$0xff] %v356
          %359 = vst [vmem:[#allocation2 + $0x8] sm:$0xf] %v357
        $region48: #{tpu_custom_call.1} parent=35 // pred_fallthru
          _
        %v360 = vld [vmem:[%s252] sm:$0xf]
        %v361 = vld [vmem:[%s252 + $0x4] sm:$0x7]
        %v362 = vld [vmem:[#allocation2] sm:$0xff]
        %v363 = vld [vmem:[#allocation2 + $0x8] sm:$0xf]
        %s364 = sadd.s32 %s266, 1
        %s365 = smul.u32 %s364, 6
        %s366 = smul.addr %s365, 4
        %s367 = scalar_lea.vmem [#allocation3], %s366
        %v368 = vld [vmem:[%s367] sm:$0xf]
        %v369 = vld [vmem:[%s367 + $0x4] sm:$0xf]
        %v370 = vld [vmem:[%s367 + $0x8] sm:$0xf]
        %v371 = vld [vmem:[%s367 + $0xc] sm:$0xf]
        %v372 = vld [vmem:[%s367 + $0x10] sm:$0xf]
        %v373 = vld [vmem:[%s367 + $0x14] sm:$0xf]
        %v376 = vunpack.c.l.b16 %v360
        %v377 = vunpack.c.l.b16 %v361
        %v378 = vpack.c.b16 %v377, %v376
        %v380 = vshrl.u32 %v378, 16
        %v382 = vshll.u32 %v378, 16
        %v384 = vrot.slane %v382, 1
        %v385 = vor.u32 %v380, %v384
        %v392 = vunpack.c.l.b16 %v368
        %v393 = vunpack.c.l.b16 %v369
        %v394 = vunpack.c.l.b16 %v370
        %v395 = vunpack.c.l.b16 %v371
        %v396 = vunpack.c.l.b16 %v372
        %v397 = vunpack.c.l.b16 %v373
        %v398 = vpack.c.b16 %v393, %v392
        %v399 = vpack.c.b16 %v395, %v394
        %v400 = vpack.c.b16 %v397, %v396
        %v405 = vsel %vm299, %v385, 0
        %407 = vmatprep.subr.bf16.mxu0 0
        %408 = vmatpush1.bf16.msra.mxu0 0
        %409 = vmatprep.subr.bf16.mxu0 0
        %410 = vmatpush1.bf16.msra.mxu0 0
        %411 = vmatprep.subr.bf16.mxu0 0
        %412 = vmatpush1.bf16.msra.mxu0 0
        %413 = vmatprep.subr.bf16.mxu0 0
        %414 = vmatpush1.bf16.msra.mxu0 0
        %415 = vmatprep.subr.bf16.mxu0 0
        %416 = vmatpush1.bf16.msra.mxu0 0
        %417 = vmatprep.subr.bf16.mxu0 0
        %418 = vmatpush1.bf16.msra.mxu0 %v400
        %419 = vmatprep.subr.bf16.mxu0 0
        %420 = vmatpush1.bf16.msra.mxu0 %v399
        %421 = vmatprep.subr.bf16.mxu0 0
        %422 = vmatpush1.bf16.msra.mxu0 %v398
        %423 = vmatprep.subr.bf16.mxu0 0
        %424 = vmatpush2.bf16.msra.mxu0 0
        %425 = vmatprep.subr.bf16.mxu0 0
        %426 = vmatpush2.bf16.msra.mxu0 0
        %427 = vmatprep.subr.bf16.mxu0 0
        %428 = vmatpush2.bf16.msra.mxu0 0
        %429 = vmatprep.subr.bf16.mxu0 0
        %430 = vmatpush2.bf16.msra.mxu0 0
        %431 = vmatprep.subr.bf16.mxu0 0
        %432 = vmatpush2.bf16.msra.mxu0 0
        %433 = vmatprep.subr.bf16.mxu0 0
        %434 = vmatpush2.bf16.msra.mxu0 0
        %435 = vmatprep.subr.bf16.mxu0 0
        %436 = vmatpush2.bf16.msra.mxu0 0
        %437 = vmatprep.subr.bf16.mxu0 0
        %438 = vmatpush2.bf16.msra.mxu0 0
        %439 = vmatprep.mubr.bf16.mxu0 0
        %440 = vmatmul.mubr.bf16.gmra.mxu0 %v405
        %v441 = vpop.f32.mrf.mxu0
        %v442 = vadd.f32 0.0, %v441
        %v443 = vpop.f32.mrf.mxu0
        %v444 = vpop.f32.mrf.mxu0
        %v445 = vadd.f32 0.0, %v444
        %v446 = vpop.f32.mrf.mxu0
        %447 = vdwg.mxu0
        %v448 = vadd.f32 %v362, %v442
        %v449 = vadd.f32 %v363, %v445
        %450 = vst [vmem:[#allocation2] sm:$0xff] %v448
        %451 = vst [vmem:[#allocation2 + $0x8] sm:$0xf] %v449
        %v452 = vld [vmem:[%s252] sm:$0xc]
        %v453 = vld [vmem:[%s252 + $0x4] sm:$0xf]
        %v454 = vld [vmem:[#allocation2] sm:$0xff]
        %v455 = vld [vmem:[#allocation2 + $0x8] sm:$0xf]
        %s456 = sadd.s32 %s266, 2
        %s457 = smul.u32 %s456, 6
        %s458 = smul.addr %s457, 4
        %s459 = scalar_lea.vmem [#allocation3], %s458
        %v460 = vld [vmem:[%s459] sm:$0xf]
        %v461 = vld [vmem:[%s459 + $0x4] sm:$0xf]
        %v462 = vld [vmem:[%s459 + $0x8] sm:$0xf]
        %v463 = vld [vmem:[%s459 + $0xc] sm:$0xf]
        %v464 = vld [vmem:[%s459 + $0x10] sm:$0xf]
        %v465 = vld [vmem:[%s459 + $0x14] sm:$0xf]
        %v468 = vunpack.c.l.b16 %v452
        %v469 = vunpack.c.l.b16 %v453
        %v470 = vpack.c.b16 %v469, %v468
        %v471 = vrot.slane %v470, 2
        %v478 = vunpack.c.l.b16 %v460
        %v479 = vunpack.c.l.b16 %v461
        %v480 = vunpack.c.l.b16 %v462
        %v481 = vunpack.c.l.b16 %v463
        %v482 = vunpack.c.l.b16 %v464
        %v483 = vunpack.c.l.b16 %v465
        %v484 = vpack.c.b16 %v479, %v478
        %v485 = vpack.c.b16 %v481, %v480
        %v486 = vpack.c.b16 %v483, %v482
        %v491 = vsel %vm299, %v471, 0
        %493 = vmatprep.subr.bf16.mxu0 0
        %494 = vmatpush1.bf16.msra.mxu0 0
        %495 = vmatprep.subr.bf16.mxu0 0
        %496 = vmatpush1.bf16.msra.mxu0 0
        %497 = vmatprep.subr.bf16.mxu0 0
        %498 = vmatpush1.bf16.msra.mxu0 0
        %499 = vmatprep.subr.bf16.mxu0 0
        %500 = vmatpush1.bf16.msra.mxu0 0
        %501 = vmatprep.subr.bf16.mxu0 0
        %502 = vmatpush1.bf16.msra.mxu0 0
        %503 = vmatprep.subr.bf16.mxu0 0
        %504 = vmatpush1.bf16.msra.mxu0 %v486
        %505 = vmatprep.subr.bf16.mxu0 0
        %506 = vmatpush1.bf16.msra.mxu0 %v485
        %507 = vmatprep.subr.bf16.mxu0 0
        %508 = vmatpush1.bf16.msra.mxu0 %v484
        %509 = vmatprep.subr.bf16.mxu0 0
        %510 = vmatpush2.bf16.msra.mxu0 0
        %511 = vmatprep.subr.bf16.mxu0 0
        %512 = vmatpush2.bf16.msra.mxu0 0
        %513 = vmatprep.subr.bf16.mxu0 0
        %514 = vmatpush2.bf16.msra.mxu0 0
        %515 = vmatprep.subr.bf16.mxu0 0
        %516 = vmatpush2.bf16.msra.mxu0 0
        %517 = vmatprep.subr.bf16.mxu0 0
        %518 = vmatpush2.bf16.msra.mxu0 0
        %519 = vmatprep.subr.bf16.mxu0 0
        %520 = vmatpush2.bf16.msra.mxu0 0
        %521 = vmatprep.subr.bf16.mxu0 0
        %522 = vmatpush2.bf16.msra.mxu0 0
        %523 = vmatprep.subr.bf16.mxu0 0
        %524 = vmatpush2.bf16.msra.mxu0 0
        %525 = vmatprep.mubr.bf16.mxu0 0
        %526 = vmatmul.mubr.bf16.gmra.mxu0 %v491
        %v527 = vpop.f32.mrf.mxu0
        %v528 = vadd.f32 0.0, %v527
        %v529 = vpop.f32.mrf.mxu0
        %v530 = vpop.f32.mrf.mxu0
        %v531 = vadd.f32 0.0, %v530
        %v532 = vpop.f32.mrf.mxu0
        %533 = vdwg.mxu0
        %v534 = vadd.f32 %v454, %v528
        %v535 = vadd.f32 %v455, %v531
        %536 = vst [vmem:[#allocation2] sm:$0xff] %v534
        %537 = vst [vmem:[#allocation2 + $0x8] sm:$0xf] %v535
        %v538 = vld [vmem:[%s252] sm:$0xc]
        %v539 = vld [vmem:[%s252 + $0x4] sm:$0xf]
        %v540 = vld [vmem:[%s252 + $0x8] sm:$0x1]
        %v541 = vld [vmem:[#allocation2] sm:$0xff]
        %v542 = vld [vmem:[#allocation2 + $0x8] sm:$0xf]
        %s543 = sadd.s32 %s266, 3
        %s544 = smul.u32 %s543, 6
        %s545 = smul.addr %s544, 4
        %s546 = scalar_lea.vmem [#allocation3], %s545
        %v547 = vld [vmem:[%s546] sm:$0xf]
        %v548 = vld [vmem:[%s546 + $0x4] sm:$0xf]
        %v549 = vld [vmem:[%s546 + $0x8] sm:$0xf]
        %v550 = vld [vmem:[%s546 + $0xc] sm:$0xf]
        %v551 = vld [vmem:[%s546 + $0x10] sm:$0xf]
        %v552 = vld [vmem:[%s546 + $0x14] sm:$0xf]
        %v556 = vunpack.c.l.b16 %v538
        %v557 = vunpack.c.l.b16 %v539
        %v558 = vunpack.c.l.b16 %v540
        %v559 = vpack.c.b16 %v557, %v556
        %v560 = vpack.c.b16 %v558, %v558
        %vm561 = vsmask.f32 5376
        %v563 = vshrl.u32 %v559, 16
        %v565 = vrot.slane %v563, 2
        %v566 = vshll.u32 %v559, 16
        %v568 = vrot.slane %v566, 3
        %v569 = vor.u32 %v565, %v568
        %v571 = vshll.u32 %v560, 16
        %v573 = vrot.slane %v571, 3
        %v574 = vsel %vm561, %v569, %v573
        %v581 = vunpack.c.l.b16 %v547
        %v582 = vunpack.c.l.b16 %v548
        %v583 = vunpack.c.l.b16 %v549
        %v584 = vunpack.c.l.b16 %v550
        %v585 = vunpack.c.l.b16 %v551
        %v586 = vunpack.c.l.b16 %v552
        %v587 = vpack.c.b16 %v582, %v581
        %v588 = vpack.c.b16 %v584, %v583
        %v589 = vpack.c.b16 %v586, %v585
        %v594 = vsel %vm299, %v574, 0
        %596 = vmatprep.subr.bf16.mxu0 0
        %597 = vmatpush1.bf16.msra.mxu0 0
        %598 = vmatprep.subr.bf16.mxu0 0
        %599 = vmatpush1.bf16.msra.mxu0 0
        %600 = vmatprep.subr.bf16.mxu0 0
        %601 = vmatpush1.bf16.msra.mxu0 0
        %602 = vmatprep.subr.bf16.mxu0 0
        %603 = vmatpush1.bf16.msra.mxu0 0
        %604 = vmatprep.subr.bf16.mxu0 0
        %605 = vmatpush1.bf16.msra.mxu0 0
        %606 = vmatprep.subr.bf16.mxu0 0
        %607 = vmatpush1.bf16.msra.mxu0 %v589
        %608 = vmatprep.subr.bf16.mxu0 0
        %609 = vmatpush1.bf16.msra.mxu0 %v588
        %610 = vmatprep.subr.bf16.mxu0 0
        %611 = vmatpush1.bf16.msra.mxu0 %v587
        %612 = vmatprep.subr.bf16.mxu0 0
        %613 = vmatpush2.bf16.msra.mxu0 0
        %614 = vmatprep.subr.bf16.mxu0 0
        %615 = vmatpush2.bf16.msra.mxu0 0
        %616 = vmatprep.subr.bf16.mxu0 0
        %617 = vmatpush2.bf16.msra.mxu0 0
        %618 = vmatprep.subr.bf16.mxu0 0
        %619 = vmatpush2.bf16.msra.mxu0 0
        %620 = vmatprep.subr.bf16.mxu0 0
        %621 = vmatpush2.bf16.msra.mxu0 0
        %622 = vmatprep.subr.bf16.mxu0 0
        %623 = vmatpush2.bf16.msra.mxu0 0
        %624 = vmatprep.subr.bf16.mxu0 0
        %625 = vmatpush2.bf16.msra.mxu0 0
        %626 = vmatprep.subr.bf16.mxu0 0
        %627 = vmatpush2.bf16.msra.mxu0 0
        %628 = vmatprep.mubr.bf16.mxu0 0
        %629 = vmatmul.mubr.bf16.gmra.mxu0 %v594
        %v630 = vpop.f32.mrf.mxu0
        %v631 = vadd.f32 0.0, %v630
        %v632 = vpop.f32.mrf.mxu0
        %v633 = vpop.f32.mrf.mxu0
        %v634 = vadd.f32 0.0, %v633
        %v635 = vpop.f32.mrf.mxu0
        %636 = vdwg.mxu0
        %v637 = vadd.f32 %v541, %v631
        %v638 = vadd.f32 %v542, %v634
        %639 = vst [vmem:[#allocation2] sm:$0xff] %v637
        %640 = vst [vmem:[#allocation2 + $0x8] sm:$0xf] %v638
        %p641 = scmp.eq.s32.totalorder %s23, 2
        // Predicated region
        $region49: #{tpu_custom_call.1} parent=35 // pred_check
          %p642 = pneg %p641
        $region50: #{tpu_custom_call.1} parent=35 // pred_check_branch
          %644 = sbr.rel (%p642) target = $region52
        $region51: #{tpu_custom_call.1} parent=35 // pred_region
          %v645 = vld [vmem:[#allocation2] sm:$0xff]
          %v646 = vld [vmem:[#allocation2 + $0x8] sm:$0xf]
          %v647 = vld [vmem:[%s2] sm:$0x1]
          %v649 = vlaneseq
          %v650 = vshrl.u32 %v649, 7
          %v651 = vsub.s32 0, %v650
          %v652 = vrot.slane %v647, %v651
          %v654 = vmul.f32 %v645, %v652
          %v655 = vmul.f32 %v646, %v652
          %v656 = vld [vmem:[%s3] sm:$0x1]
          %v658 = vlaneseq
          %v659 = vshrl.u32 %v658, 7
          %v660 = vsub.s32 0, %v659
          %v661 = vrot.slane %v656, %v660
          %v663 = vadd.f32 %v654, %v661
          %v664 = vadd.f32 %v655, %v661
          %v665 = vmax.f32 %v663, 0.0
          %v666 = vmax.f32 %v664, 0.0
          %v667 = vpack.c.bf16 %v666, %v665
          %v669 = vunpack.c.l.b16 %v667
          %v670 = vunpack.c.h.b16 %v667
          %v671 = vpack.c.b16 %v669, %v669
          %v672 = vpack.c.b16 %v670, %v670
          %675 = vst [vmem:[%s262] sm:$0xf] %v671
          %676 = vst [vmem:[%s262 + $0x4] sm:$0x3] %v672
        $region52: #{tpu_custom_call.1} parent=35 // pred_fallthru
          _
        %p677 = scmp.lt.s32.totalorder %s21, 1
        %s678 = scalar_select %p677, %s21, 1
        %p679 = scmp.lt.s32.totalorder %s22, 2
        %s680 = scalar_select %p679, %s22, 2
        %s681 = smul.addr %s680, 2
        %s682 = smul.addr %s678, 6
        %s683 = sadd.s32 %s681, %s682
        %s684 = smul.addr %s683, 4
        %s685 = scalar_lea.vmem %s4, %s684
        // Predicated region
        $region53: #{tpu_custom_call.1} parent=35 // pred_check
          %p686 = pneg %p148
        $region54: #{tpu_custom_call.1} parent=35 // pred_check_branch
          %688 = sbr.rel (%p686) target = $region56
        $region55: #{tpu_custom_call.1} parent=35 // pred_region
          _
        $region56: #{tpu_custom_call.1} parent=35 // pred_fallthru
          _
      $region36: #{tpu_custom_call.1} parent=5 // pred_fallthru
        _
      %p689 = scmp.le.s32.totalorder 2, %s11
      // Predicated region
      $region57: #{tpu_custom_call.1} parent=5 // pred_check
        %p690 = pneg %p689
      $region58: #{tpu_custom_call.1} parent=5 // pred_check_branch
        %692 = sbr.rel (%p690) target = $region60
      $region59: #{tpu_custom_call.1} parent=5 // pred_region
        %s693 = ssub.s32 %s11, 2
        // Predicated region
        $region61: #{tpu_custom_call.1} parent=59 // pred_check
          %p694 = pneg %p154
        $region62: #{tpu_custom_call.1} parent=59 // pred_check_branch
          %696 = sbr.rel (%p694) target = $region64
        $region63: #{tpu_custom_call.1} parent=59 // pred_region
          %p697 = scmp.lt.s32.totalorder %s24, 1
          %s698 = scalar_select %p697, %s24, 1
          %p699 = scmp.lt.s32.totalorder %s25, 2
          %s700 = scalar_select %p699, %s25, 2
          %s701 = smul.addr %s700, 2
          %s702 = smul.addr %s698, 6
          %s703 = sadd.s32 %s701, %s702
          %s704 = smul.addr %s703, 4
          %s705 = scalar_lea.vmem %s4, %s704
        $region64: #{tpu_custom_call.1} parent=59 // pred_fallthru
          _
      $region60: #{tpu_custom_call.1} parent=5 // pred_fallthru
        _
    $region6: #{tpu_custom_call.1} parent=1 // loop_footer
      %s15 = sadd.s32 1, %s11
    $region7: #{tpu_custom_call.1} parent=1 // loop_footer_branch
      %10 = sbr.rel target = $region3
    $region8: #{tpu_custom_call.1} parent=1 // loop_exit
      _
    %706 = vsyncpa [#allocation4], 1
    %s707 = scalar_lea.sflag [#allocation4], 1
    %708 = vsyncpa %s707, 1

</llo_original>
